<compile_context>
chip_gen: v5e
topology: v5e:2x2
jax: 0.10.0
libtpu: 0.0.40
codegen_flags: <defaults>
</compile_context>

<pallas_src>
import functools

import jax
import jax.numpy as jnp
from jax.experimental import pallas as pl
from jax.experimental.pallas import tpu as pltpu


# --------------------------- host-side constants ---------------------------- #
def _upsample_sel(d, h, w):
    """One-hot (Ms, M) matrix so that u = z @ sel is an exact nearest-2x upsample
    along the flattened (d,h,w) -> (2d,2h,2w) spatial axis."""
    D, H, W = 2 * d, 2 * h, 2 * w
    M, Ms = D * H * W, d * h * w
    col = jnp.arange(M)
    wi = col % W
    hi = (col // W) % H
    di = col // (W * H)
    src = (di // 2) * (h * w) + (hi // 2) * w + (wi // 2)          # coarse flat idx
    return (src[None, :] == jnp.arange(Ms)[:, None]).astype(jnp.float32)


def _tap_masks(d, h, w):
    """(27, M) f32 validity masks for the 3x3x3 zero-padded conv taps."""
    D, H, W = 2 * d, 2 * h, 2 * w
    M = D * H * W
    col = jnp.arange(M)
    wq = col % W
    hq = (col // W) % H
    dq = col // (W * H)
    rows = []
    for od in (-1, 0, 1):
        for oh in (-1, 0, 1):
            for ow in (-1, 0, 1):
                valid = ((dq + od >= 0) & (dq + od < D) &
                         (hq + oh >= 0) & (hq + oh < H) &
                         (wq + ow >= 0) & (wq + ow < W))
                rows.append(valid.astype(jnp.float32))
    return jnp.stack(rows)


def _block_diag(w, bb):
    """(co, ci) -> (bb*co, bb*ci) block-diagonal replication (batch packing)."""
    co, ci = w.shape
    out = jnp.zeros((bb * co, bb * ci), w.dtype)
    for b in range(bb):
        out = out.at[b * co:(b + 1) * co, b * ci:(b + 1) * ci].set(w)
    return out


# --------------------------------- kernel ----------------------------------- #
def _fused_layer_kernel(prev_ref, skip_ref, sel_ref, mask_ref,
                        w1_ref, b1_ref, w3_ref, b3_ref,
                        o_ref, ubuf, tbuf, *, m, halo, r, hw, w):
    """Fused conv1x1x1 -> 2x nearest upsample -> skip add -> conv3x3x3 (pad=1).

    prev_ref : (1, bb*Ci, ms)     coarse features (batch packed on sublanes)
    skip_ref : (1, R, M)          fine skip features, R = bb*Co
    sel_ref  : (ms, M)            one-hot nearest-upsample matrix (resident)
    mask_ref : (27, M)            per-tap zero-padding masks (resident)
    w1_ref   : (R, bb*Ci)         block-diagonal 1x1x1 weight
    b1_ref   : (R, 1)
    w3_ref   : (R, 27*R)          tap-stacked block-diagonal 3x3x3 weight
    b3_ref   : (R, 1)
    o_ref    : (1, R, M)
    ubuf     : (R, M + 2*halo)    zero-halo staging buffer (scratch)
    tbuf     : (27*R, M)          stacked masked taps (scratch)
    """
    # Zero only the halos, only once; the interior is overwritten every step.
    @pl.when(pl.program_id(0) == 0)
    def _init_halo():
        ubuf[:, :halo] = jnp.zeros((r, halo), jnp.float32)
        ubuf[:, halo + m:] = jnp.zeros((r, halo), jnp.float32)

    # ---- 1x1x1 conv (block-diag over packed batch): z = W1s @ prev + b1 ----
    z = jnp.dot(w1_ref[...], prev_ref[0], preferred_element_type=jnp.float32)
    z = z + b1_ref[...]

    # ---- nearest 2x upsample (host-precomputed one-hot matmul) + skip add ----
    u = jnp.dot(z, sel_ref[...], preferred_element_type=jnp.float32)
    u = u + skip_ref[0]

    # ---- stage fused input once; build all 27 masked shifted taps ----
    ubuf[:, halo:halo + m] = u
    t = 0
    for od in (-1, 0, 1):
        for oh in (-1, 0, 1):
            for ow in (-1, 0, 1):
                off = od * hw + oh * w + ow
                tap = ubuf[:, halo + off:halo + off + m]          # (R, M)
                tbuf[t * r:(t + 1) * r, :] = tap * mask_ref[t:t + 1, :]
                t += 1

    # ---- single K = 27*R contraction on the MXU ----
    acc = jnp.dot(w3_ref[...], tbuf[...], preferred_element_type=jnp.float32)
    o_ref[0] = (acc + b3_ref[...]).astype(o_ref.dtype)


# ------------------------------ per-level call ------------------------------ #
def _fpn_layer(prev_flat, skip_flat, w1, b1, w3, b3, coarse_dims, bb):
    """One FPN level. prev_flat: (N, Ci, d*h*w); skip_flat: (N, Co, 8*d*h*w)."""
    n, ci, ms = prev_flat.shape
    _, co, m = skip_flat.shape
    d, h, w = coarse_dims
    D, H, W = 2 * d, 2 * h, 2 * w
    assert ms == d * h * w and m == D * H * W
    assert n % bb == 0
    R = bb * co
    halo = -(-(H * W + W + 1) // 128) * 128          # per-level halo, lane aligned

    # host-side tiny, grid-invariant constants
    sel = _upsample_sel(d, h, w)                     # (ms, m)
    masks = _tap_masks(d, h, w)                      # (27, m)

    # weight/bias re-layout (tiny, host side)
    w1s = _block_diag(w1.reshape(co, ci), bb)                        # (R, bb*ci)
    b1s = jnp.tile(b1.reshape(co, 1), (bb, 1))                       # (R, 1)
    w3_taps = jnp.transpose(w3, (2, 3, 4, 0, 1)).reshape(27, co, co)
    w3s = jnp.concatenate([_block_diag(w3_taps[t], bb) for t in range(27)],
                          axis=1)                                    # (R, 27*R)
    b3s = jnp.tile(b3.reshape(co, 1), (bb, 1))                       # (R, 1)

    # free reshapes: pack bb batch elements into the channel/sublane axis
    prev_p = prev_flat.reshape(n // bb, bb * ci, ms)
    skip_p = skip_flat.reshape(n // bb, R, m)

    kernel = functools.partial(_fused_layer_kernel, m=m, halo=halo, r=R,
                               hw=H * W, w=W)

    steps = n // bb
    flops = 2 * steps * (R * (bb * ci) * ms + R * ms * m + R * (27 * R) * m)
    bytes_accessed = 4 * (prev_p.size + skip_p.size + sel.size + masks.size +
                          w1s.size + b1s.size + w3s.size + b3s.size + steps * R * m)

    out = pl.pallas_call(
        kernel,
        out_shape=jax.ShapeDtypeStruct((steps, R, m), skip_flat.dtype),
        grid_spec=pltpu.PrefetchScalarGridSpec(
            num_scalar_prefetch=0,
            grid=(steps,),
            in_specs=[
                pl.BlockSpec((1, bb * ci, ms), lambda i: (i, 0, 0)),   # prev
                pl.BlockSpec((1, R, m), lambda i: (i, 0, 0)),          # skip
                pl.BlockSpec((ms, m), lambda i: (0, 0)),               # sel (resident)
                pl.BlockSpec((27, m), lambda i: (0, 0)),               # masks (resident)
                pl.BlockSpec((R, bb * ci), lambda i: (0, 0)),          # w1s
                pl.BlockSpec((R, 1), lambda i: (0, 0)),                # b1s
                pl.BlockSpec((R, 27 * R), lambda i: (0, 0)),           # w3s
                pl.BlockSpec((R, 1), lambda i: (0, 0)),                # b3s
            ],
            out_specs=pl.BlockSpec((1, R, m), lambda i: (i, 0, 0)),
            scratch_shapes=[pltpu.VMEM((R, m + 2 * halo), jnp.float32),
                            pltpu.VMEM((27 * R, m), jnp.float32)],
        ),
        compiler_params=pltpu.CompilerParams(
            dimension_semantics=("parallel",)),
        cost_estimate=pl.CostEstimate(flops=flops, transcendentals=0,
                                      bytes_accessed=bytes_accessed),
    )(prev_p, skip_p, sel, masks, w1s, b1s, w3s, b3s)

    return out.reshape(n, co, m)   # free un-pack of the batch


# -------------------------------- FPN_up_g ---------------------------------- #
def fpn_up_g_forward(xs_ncdhw, params):
    """xs_ncdhw: pyramid of NCDHW arrays (smallest level first).  params: list of
    (w1, b1, w3, b3) with PyTorch Conv3d weight layout (O, I, kd, kh, kw).
    Returns NCDHW outputs, reversed (matches the PyTorch module)."""
    depth = len(params)
    prev = xs_ncdhw[0]
    n, c0, d0, h0, w0 = prev.shape
    bb = 2 if n % 2 == 0 else 1      # batch elements packed per grid step
    prev_flat = prev.reshape(n, c0, d0 * h0 * w0)     # free reshape
    dims = (d0, h0, w0)

    # TODO(synk): fuse all levels into one pallas_call (level-i output stays in
    #             VMEM and feeds level-i+1) to drop the per-level HBM round trip.
    feats = []
    for i in range(depth):
        w1, b1, w3, b3 = params[i]
        skip = xs_ncdhw[i + 1]
        _, co, Df, Hf, Wf = skip.shape
        skip_flat = skip.reshape(n, co, Df * Hf * Wf)
        out_flat = _fpn_layer(prev_flat, skip_flat, w1, b1, w3, b3, dims, bb)
        feats.append(out_flat.reshape(n, co, Df, Hf, Wf))
        prev_flat = out_flat                          # feeds next level directly
        dims = (Df, Hf, Wf)
    return feats[::-1]


# ------------------------- pure-JAX reference (check) ----------------------- #
def fpn_up_g_reference(xs_ncdhw, params):
    dn = ("NCDHW", "OIDHW", "NCDHW")
    feats = []
    prev = xs_ncdhw[0]
    for i in range(len(params)):
        w1, b1, w3, b3 = params[i]
        prev = jax.lax.conv_general_dilated(prev, w1, (1, 1, 1), "VALID",
                                            dimension_numbers=dn)
        prev = prev + b1.reshape(1, -1, 1, 1, 1)
        prev = jnp.repeat(jnp.repeat(jnp.repeat(prev, 2, axis=2), 2, axis=3), 2, axis=4)
        prev = prev + xs_ncdhw[i + 1]
        prev = jax.lax.conv_general_dilated(prev, w3, (1, 1, 1), "SAME",
                                            dimension_numbers=dn)
        prev = prev + b3.reshape(1, -1, 1, 1, 1)
        feats.append(prev)
    return feats[::-1]


# ---------------------------------- main ------------------------------------ #
if __name__ == "__main__":
    key = jax.random.PRNGKey(0)

    # Module config: in_channel_list=[8, 4, 4], out_channel_list=[4, 4] -> depth=2
    in_channel_list = [8, 4, 4]
    out_channel_list = [4, 4]
    depth = len(out_channel_list)

    # Deterministic parameters (PyTorch Conv3d weight layout O, I, kd, kh, kw).
    params = []
    for i in range(depth):
        ci, co = in_channel_list[i], out_channel_list[i]
        key, k1, k2, k3, k4 = jax.random.split(key, 5)
        w1 = jax.random.normal(k1, (co, ci, 1, 1, 1), jnp.float32) * 0.1
        b1 = jax.random.normal(k2, (co,), jnp.float32) * 0.1
        w3 = jax.random.normal(k3, (co, co, 3, 3, 3), jnp.float32) * 0.1
        b3 = jax.random.normal(k4, (co,), jnp.float32) * 0.1
        params.append((w1, b1, w3, b3))

    # Input pyramid (NCDHW, smallest level first, as the PyTorch forward expects):
    key, kx0, kx1, kx2 = jax.random.split(key, 4)
    x0 = jax.random.normal(kx0, (2, in_channel_list[0], 2, 2, 2), jnp.float32)
    x1 = jax.random.normal(kx1, (2, out_channel_list[0], 4, 4, 4), jnp.float32)
    x2 = jax.random.normal(kx2, (2, out_channel_list[1], 8, 8, 8), jnp.float32)
    xs = [x0, x1, x2]

    outs = jax.block_until_ready(fpn_up_g_forward(xs, params))
    refs = jax.block_until_ready(fpn_up_g_reference(xs, params))
    for o, r in zip(outs, refs):
        assert o.shape == r.shape, (o.shape, r.shape)
        assert jnp.allclose(o, r, atol=2e-5, rtol=2e-5), float(jnp.max(jnp.abs(o - r)))

    print("KERNEL_OK")
</pallas_src>

<mosaic_0001>
module attributes {stable_mosaic.version = 11 : i64} {
  func.func @_fused_layer_kernel(%arg0: i32, %arg1: memref<1x16x8xf32, #tpu.memory_space<vmem>>, %arg2: memref<1x8x64xf32, #tpu.memory_space<vmem>>, %arg3: memref<8x64xf32, #tpu.memory_space<vmem>>, %arg4: memref<27x64xf32, #tpu.memory_space<vmem>>, %arg5: memref<8x16xf32, #tpu.memory_space<vmem>>, %arg6: memref<8x1xf32, #tpu.memory_space<vmem>>, %arg7: memref<8x216xf32, #tpu.memory_space<vmem>>, %arg8: memref<8x1xf32, #tpu.memory_space<vmem>>, %arg9: memref<1x8x64xf32, #tpu.memory_space<vmem>>, %arg10: memref<8x320xf32, #tpu.memory_space<vmem>>, %arg11: memref<216x64xf32, #tpu.memory_space<vmem>>) attributes {dimension_semantics = [#tpu.dimension_semantics<parallel>], iteration_bounds = array<i64: 1>, scalar_prefetch = 0 : i64, scratch_operands = 2 : i64, tpu.core_type = #tpu.core_type<tc>, window_params = [{transform_indices = @transform_0, window_bounds = array<i64: 1, 16, 8>}, {transform_indices = @transform_1, window_bounds = array<i64: 1, 8, 64>}, {pipeline_mode = #tpu.pipeline_mode<synchronous>, transform_indices = @transform_2, window_bounds = array<i64: 8, 64>}, {pipeline_mode = #tpu.pipeline_mode<synchronous>, transform_indices = @transform_3, window_bounds = array<i64: 27, 64>}, {pipeline_mode = #tpu.pipeline_mode<synchronous>, transform_indices = @transform_4, window_bounds = array<i64: 8, 16>}, {pipeline_mode = #tpu.pipeline_mode<synchronous>, transform_indices = @transform_5, window_bounds = array<i64: 8, 1>}, {pipeline_mode = #tpu.pipeline_mode<synchronous>, transform_indices = @transform_6, window_bounds = array<i64: 8, 216>}, {pipeline_mode = #tpu.pipeline_mode<synchronous>, transform_indices = @transform_7, window_bounds = array<i64: 8, 1>}, {transform_indices = @transform_8, window_bounds = array<i64: 1, 8, 64>}]} {
    %c0_i32 = arith.constant 0 : i32
    %0 = arith.cmpi eq, %arg0, %c0_i32 : i32
    %1 = arith.extui %0 : i1 to i32
    %c0_i32_0 = arith.constant 0 : i32
    %2 = arith.cmpi ne, %1, %c0_i32_0 : i32
    scf.if %2 {
      %cst_114 = arith.constant 0.000000e+00 : f32
      %160 = vector.broadcast %cst_114 : f32 to vector<8x128xf32>
      %c0_115 = arith.constant 0 : index
      %c0_116 = arith.constant 0 : index
      %161 = vector.load %arg10[%c0_115, %c0_116] : memref<8x320xf32, #tpu.memory_space<vmem>>, vector<8x128xf32>
      tpu.vector_store %arg10[%c0_115, %c0_116], %160 {strides = array<i32>} : memref<8x320xf32, #tpu.memory_space<vmem>>, vector<8x128xf32>,
      %cst_117 = arith.constant 0.000000e+00 : f32
      %162 = vector.broadcast %cst_117 : f32 to vector<8x128xf32>
      %c0_118 = arith.constant 0 : index
      %c192_119 = arith.constant 192 : index
      %163 = vector.load %arg10[%c0_118, %c192_119] : memref<8x320xf32, #tpu.memory_space<vmem>>, vector<8x128xf32>
      tpu.vector_store %arg10[%c0_118, %c192_119], %162 {strides = array<i32>} : memref<8x320xf32, #tpu.memory_space<vmem>>, vector<8x128xf32>,
    } else {
    }
    %c0 = arith.constant 0 : index
    %c0_1 = arith.constant 0 : index
    %3 = vector.load %arg5[%c0, %c0_1] : memref<8x16xf32, #tpu.memory_space<vmem>>, vector<8x16xf32>
    %c0_2 = arith.constant 0 : index
    %c0_3 = arith.constant 0 : index
    %c0_4 = arith.constant 0 : index
    %4 = vector.load %arg1[%c0_2, %c0_3, %c0_4] : memref<1x16x8xf32, #tpu.memory_space<vmem>>, vector<1x16x8xf32>
    %5 = vector.shape_cast %4 : vector<1x16x8xf32> to vector<16x8xf32>
    %cst = arith.constant dense<0.000000e+00> : vector<8x8xf32>
    %6 = tpu.matmul %3, %5, %cst {dimension_numbers = #tpu.dot_dimension_numbers<[1], [0], [0], [1], [0, 0, 1, 1], [], []>} : vector<8x16xf32>, vector<16x8xf32>, vector<8x8xf32> -> vector<8x8xf32>
    %c0_5 = arith.constant 0 : index
    %c0_6 = arith.constant 0 : index
    %7 = vector.load %arg6[%c0_5, %c0_6] : memref<8x1xf32, #tpu.memory_space<vmem>>, vector<8x1xf32>
    %8 = vector.broadcast %7 : vector<8x1xf32> to vector<8x8xf32>
    %9 = arith.addf %6, %8 : vector<8x8xf32>
    %c0_7 = arith.constant 0 : index
    %c0_8 = arith.constant 0 : index
    %10 = vector.load %arg3[%c0_7, %c0_8] : memref<8x64xf32, #tpu.memory_space<vmem>>, vector<8x64xf32>
    %cst_9 = arith.constant dense<0.000000e+00> : vector<8x64xf32>
    %11 = tpu.matmul %9, %10, %cst_9 {dimension_numbers = #tpu.dot_dimension_numbers<[1], [0], [0], [1], [0, 0, 1, 1], [], []>} : vector<8x8xf32>, vector<8x64xf32>, vector<8x64xf32> -> vector<8x64xf32>
    %c0_10 = arith.constant 0 : index
    %c0_11 = arith.constant 0 : index
    %c0_12 = arith.constant 0 : index
    %12 = vector.load %arg2[%c0_10, %c0_11, %c0_12] : memref<1x8x64xf32, #tpu.memory_space<vmem>>, vector<1x8x64xf32>
    %13 = vector.shape_cast %12 : vector<1x8x64xf32> to vector<8x64xf32>
    %14 = arith.addf %11, %13 : vector<8x64xf32>
    %c0_13 = arith.constant 0 : index
    %c128 = arith.constant 128 : index
    %15 = vector.load %arg10[%c0_13, %c128] : memref<8x320xf32, #tpu.memory_space<vmem>>, vector<8x64xf32>
    tpu.vector_store %arg10[%c0_13, %c128], %14 {strides = array<i32>} : memref<8x320xf32, #tpu.memory_space<vmem>>, vector<8x64xf32>,
    %c0_14 = arith.constant 0 : index
    %c107 = arith.constant 107 : index
    %16 = vector.load %arg10[%c0_14, %c107] : memref<8x320xf32, #tpu.memory_space<vmem>>, vector<8x64xf32>
    %c0_15 = arith.constant 0 : index
    %c0_16 = arith.constant 0 : index
    %17 = vector.load %arg4[%c0_15, %c0_16] : memref<27x64xf32, #tpu.memory_space<vmem>>, vector<1x64xf32>
    %18 = vector.broadcast %17 : vector<1x64xf32> to vector<8x64xf32>
    %19 = arith.mulf %16, %18 : vector<8x64xf32>
    %c0_17 = arith.constant 0 : index
    %c0_18 = arith.constant 0 : index
    %20 = vector.load %arg11[%c0_17, %c0_18] : memref<216x64xf32, #tpu.memory_space<vmem>>, vector<8x64xf32>
    tpu.vector_store %arg11[%c0_17, %c0_18], %19 {strides = array<i32>} : memref<216x64xf32, #tpu.memory_space<vmem>>, vector<8x64xf32>,
    %c0_19 = arith.constant 0 : index
    %c108 = arith.constant 108 : index
    %21 = vector.load %arg10[%c0_19, %c108] : memref<8x320xf32, #tpu.memory_space<vmem>>, vector<8x64xf32>
    %c1 = arith.constant 1 : index
    %c0_20 = arith.constant 0 : index
    %22 = vector.load %arg4[%c1, %c0_20] : memref<27x64xf32, #tpu.memory_space<vmem>>, vector<1x64xf32>
    %23 = vector.broadcast %22 : vector<1x64xf32> to vector<8x64xf32>
    %24 = arith.mulf %21, %23 : vector<8x64xf32>
    %c8 = arith.constant 8 : index
    %c0_21 = arith.constant 0 : index
    %25 = vector.load %arg11[%c8, %c0_21] : memref<216x64xf32, #tpu.memory_space<vmem>>, vector<8x64xf32>
    tpu.vector_store %arg11[%c8, %c0_21], %24 {strides = array<i32>} : memref<216x64xf32, #tpu.memory_space<vmem>>, vector<8x64xf32>,
    %c0_22 = arith.constant 0 : index
    %c109 = arith.constant 109 : index
    %26 = vector.load %arg10[%c0_22, %c109] : memref<8x320xf32, #tpu.memory_space<vmem>>, vector<8x64xf32>
    %c2 = arith.constant 2 : index
    %c0_23 = arith.constant 0 : index
    %27 = vector.load %arg4[%c2, %c0_23] : memref<27x64xf32, #tpu.memory_space<vmem>>, vector<1x64xf32>
    %28 = vector.broadcast %27 : vector<1x64xf32> to vector<8x64xf32>
    %29 = arith.mulf %26, %28 : vector<8x64xf32>
    %c16 = arith.constant 16 : index
    %c0_24 = arith.constant 0 : index
    %30 = vector.load %arg11[%c16, %c0_24] : memref<216x64xf32, #tpu.memory_space<vmem>>, vector<8x64xf32>
    tpu.vector_store %arg11[%c16, %c0_24], %29 {strides = array<i32>} : memref<216x64xf32, #tpu.memory_space<vmem>>, vector<8x64xf32>,
    %c0_25 = arith.constant 0 : index
    %c111 = arith.constant 111 : index
    %31 = vector.load %arg10[%c0_25, %c111] : memref<8x320xf32, #tpu.memory_space<vmem>>, vector<8x64xf32>
    %c3 = arith.constant 3 : index
    %c0_26 = arith.constant 0 : index
    %32 = vector.load %arg4[%c3, %c0_26] : memref<27x64xf32, #tpu.memory_space<vmem>>, vector<1x64xf32>
    %33 = vector.broadcast %32 : vector<1x64xf32> to vector<8x64xf32>
    %34 = arith.mulf %31, %33 : vector<8x64xf32>
    %c24 = arith.constant 24 : index
    %c0_27 = arith.constant 0 : index
    %35 = vector.load %arg11[%c24, %c0_27] : memref<216x64xf32, #tpu.memory_space<vmem>>, vector<8x64xf32>
    tpu.vector_store %arg11[%c24, %c0_27], %34 {strides = array<i32>} : memref<216x64xf32, #tpu.memory_space<vmem>>, vector<8x64xf32>,
    %c0_28 = arith.constant 0 : index
    %c112 = arith.constant 112 : index
    %36 = vector.load %arg10[%c0_28, %c112] : memref<8x320xf32, #tpu.memory_space<vmem>>, vector<8x64xf32>
    %c4 = arith.constant 4 : index
    %c0_29 = arith.constant 0 : index
    %37 = vector.load %arg4[%c4, %c0_29] : memref<27x64xf32, #tpu.memory_space<vmem>>, vector<1x64xf32>
    %38 = vector.broadcast %37 : vector<1x64xf32> to vector<8x64xf32>
    %39 = arith.mulf %36, %38 : vector<8x64xf32>
    %c32 = arith.constant 32 : index
    %c0_30 = arith.constant 0 : index
    %40 = vector.load %arg11[%c32, %c0_30] : memref<216x64xf32, #tpu.memory_space<vmem>>, vector<8x64xf32>
    tpu.vector_store %arg11[%c32, %c0_30], %39 {strides = array<i32>} : memref<216x64xf32, #tpu.memory_space<vmem>>, vector<8x64xf32>,
    %c0_31 = arith.constant 0 : index
    %c113 = arith.constant 113 : index
    %41 = vector.load %arg10[%c0_31, %c113] : memref<8x320xf32, #tpu.memory_space<vmem>>, vector<8x64xf32>
    %c5 = arith.constant 5 : index
    %c0_32 = arith.constant 0 : index
    %42 = vector.load %arg4[%c5, %c0_32] : memref<27x64xf32, #tpu.memory_space<vmem>>, vector<1x64xf32>
    %43 = vector.broadcast %42 : vector<1x64xf32> to vector<8x64xf32>
    %44 = arith.mulf %41, %43 : vector<8x64xf32>
    %c40 = arith.constant 40 : index
    %c0_33 = arith.constant 0 : index
    %45 = vector.load %arg11[%c40, %c0_33] : memref<216x64xf32, #tpu.memory_space<vmem>>, vector<8x64xf32>
    tpu.vector_store %arg11[%c40, %c0_33], %44 {strides = array<i32>} : memref<216x64xf32, #tpu.memory_space<vmem>>, vector<8x64xf32>,
    %c0_34 = arith.constant 0 : index
    %c115 = arith.constant 115 : index
    %46 = vector.load %arg10[%c0_34, %c115] : memref<8x320xf32, #tpu.memory_space<vmem>>, vector<8x64xf32>
    %c6 = arith.constant 6 : index
    %c0_35 = arith.constant 0 : index
    %47 = vector.load %arg4[%c6, %c0_35] : memref<27x64xf32, #tpu.memory_space<vmem>>, vector<1x64xf32>
    %48 = vector.broadcast %47 : vector<1x64xf32> to vector<8x64xf32>
    %49 = arith.mulf %46, %48 : vector<8x64xf32>
    %c48 = arith.constant 48 : index
    %c0_36 = arith.constant 0 : index
    %50 = vector.load %arg11[%c48, %c0_36] : memref<216x64xf32, #tpu.memory_space<vmem>>, vector<8x64xf32>
    tpu.vector_store %arg11[%c48, %c0_36], %49 {strides = array<i32>} : memref<216x64xf32, #tpu.memory_space<vmem>>, vector<8x64xf32>,
    %c0_37 = arith.constant 0 : index
    %c116 = arith.constant 116 : index
    %51 = vector.load %arg10[%c0_37, %c116] : memref<8x320xf32, #tpu.memory_space<vmem>>, vector<8x64xf32>
    %c7 = arith.constant 7 : index
    %c0_38 = arith.constant 0 : index
    %52 = vector.load %arg4[%c7, %c0_38] : memref<27x64xf32, #tpu.memory_space<vmem>>, vector<1x64xf32>
    %53 = vector.broadcast %52 : vector<1x64xf32> to vector<8x64xf32>
    %54 = arith.mulf %51, %53 : vector<8x64xf32>
    %c56 = arith.constant 56 : index
    %c0_39 = arith.constant 0 : index
    %55 = vector.load %arg11[%c56, %c0_39] : memref<216x64xf32, #tpu.memory_space<vmem>>, vector<8x64xf32>
    tpu.vector_store %arg11[%c56, %c0_39], %54 {strides = array<i32>} : memref<216x64xf32, #tpu.memory_space<vmem>>, vector<8x64xf32>,
    %c0_40 = arith.constant 0 : index
    %c117 = arith.constant 117 : index
    %56 = vector.load %arg10[%c0_40, %c117] : memref<8x320xf32, #tpu.memory_space<vmem>>, vector<8x64xf32>
    %c8_41 = arith.constant 8 : index
    %c0_42 = arith.constant 0 : index
    %57 = vector.load %arg4[%c8_41, %c0_42] : memref<27x64xf32, #tpu.memory_space<vmem>>, vector<1x64xf32>
    %58 = vector.broadcast %57 : vector<1x64xf32> to vector<8x64xf32>
    %59 = arith.mulf %56, %58 : vector<8x64xf32>
    %c64 = arith.constant 64 : index
    %c0_43 = arith.constant 0 : index
    %60 = vector.load %arg11[%c64, %c0_43] : memref<216x64xf32, #tpu.memory_space<vmem>>, vector<8x64xf32>
    tpu.vector_store %arg11[%c64, %c0_43], %59 {strides = array<i32>} : memref<216x64xf32, #tpu.memory_space<vmem>>, vector<8x64xf32>,
    %c0_44 = arith.constant 0 : index
    %c123 = arith.constant 123 : index
    %61 = vector.load %arg10[%c0_44, %c123] : memref<8x320xf32, #tpu.memory_space<vmem>>, vector<8x64xf32>
    %c9 = arith.constant 9 : index
    %c0_45 = arith.constant 0 : index
    %62 = vector.load %arg4[%c9, %c0_45] : memref<27x64xf32, #tpu.memory_space<vmem>>, vector<1x64xf32>
    %63 = vector.broadcast %62 : vector<1x64xf32> to vector<8x64xf32>
    %64 = arith.mulf %61, %63 : vector<8x64xf32>
    %c72 = arith.constant 72 : index
    %c0_46 = arith.constant 0 : index
    %65 = vector.load %arg11[%c72, %c0_46] : memref<216x64xf32, #tpu.memory_space<vmem>>, vector<8x64xf32>
    tpu.vector_store %arg11[%c72, %c0_46], %64 {strides = array<i32>} : memref<216x64xf32, #tpu.memory_space<vmem>>, vector<8x64xf32>,
    %c0_47 = arith.constant 0 : index
    %c124 = arith.constant 124 : index
    %66 = vector.load %arg10[%c0_47, %c124] : memref<8x320xf32, #tpu.memory_space<vmem>>, vector<8x64xf32>
    %c10 = arith.constant 10 : index
    %c0_48 = arith.constant 0 : index
    %67 = vector.load %arg4[%c10, %c0_48] : memref<27x64xf32, #tpu.memory_space<vmem>>, vector<1x64xf32>
    %68 = vector.broadcast %67 : vector<1x64xf32> to vector<8x64xf32>
    %69 = arith.mulf %66, %68 : vector<8x64xf32>
    %c80 = arith.constant 80 : index
    %c0_49 = arith.constant 0 : index
    %70 = vector.load %arg11[%c80, %c0_49] : memref<216x64xf32, #tpu.memory_space<vmem>>, vector<8x64xf32>
    tpu.vector_store %arg11[%c80, %c0_49], %69 {strides = array<i32>} : memref<216x64xf32, #tpu.memory_space<vmem>>, vector<8x64xf32>,
    %c0_50 = arith.constant 0 : index
    %c125 = arith.constant 125 : index
    %71 = vector.load %arg10[%c0_50, %c125] : memref<8x320xf32, #tpu.memory_space<vmem>>, vector<8x64xf32>
    %c11 = arith.constant 11 : index
    %c0_51 = arith.constant 0 : index
    %72 = vector.load %arg4[%c11, %c0_51] : memref<27x64xf32, #tpu.memory_space<vmem>>, vector<1x64xf32>
    %73 = vector.broadcast %72 : vector<1x64xf32> to vector<8x64xf32>
    %74 = arith.mulf %71, %73 : vector<8x64xf32>
    %c88 = arith.constant 88 : index
    %c0_52 = arith.constant 0 : index
    %75 = vector.load %arg11[%c88, %c0_52] : memref<216x64xf32, #tpu.memory_space<vmem>>, vector<8x64xf32>
    tpu.vector_store %arg11[%c88, %c0_52], %74 {strides = array<i32>} : memref<216x64xf32, #tpu.memory_space<vmem>>, vector<8x64xf32>,
    %c0_53 = arith.constant 0 : index
    %c127 = arith.constant 127 : index
    %76 = vector.load %arg10[%c0_53, %c127] : memref<8x320xf32, #tpu.memory_space<vmem>>, vector<8x64xf32>
    %c12 = arith.constant 12 : index
    %c0_54 = arith.constant 0 : index
    %77 = vector.load %arg4[%c12, %c0_54] : memref<27x64xf32, #tpu.memory_space<vmem>>, vector<1x64xf32>
    %78 = vector.broadcast %77 : vector<1x64xf32> to vector<8x64xf32>
    %79 = arith.mulf %76, %78 : vector<8x64xf32>
    %c96 = arith.constant 96 : index
    %c0_55 = arith.constant 0 : index
    %80 = vector.load %arg11[%c96, %c0_55] : memref<216x64xf32, #tpu.memory_space<vmem>>, vector<8x64xf32>
    tpu.vector_store %arg11[%c96, %c0_55], %79 {strides = array<i32>} : memref<216x64xf32, #tpu.memory_space<vmem>>, vector<8x64xf32>,
    %c0_56 = arith.constant 0 : index
    %c128_57 = arith.constant 128 : index
    %81 = vector.load %arg10[%c0_56, %c128_57] : memref<8x320xf32, #tpu.memory_space<vmem>>, vector<8x64xf32>
    %c13 = arith.constant 13 : index
    %c0_58 = arith.constant 0 : index
    %82 = vector.load %arg4[%c13, %c0_58] : memref<27x64xf32, #tpu.memory_space<vmem>>, vector<1x64xf32>
    %83 = vector.broadcast %82 : vector<1x64xf32> to vector<8x64xf32>
    %84 = arith.mulf %81, %83 : vector<8x64xf32>
    %c104 = arith.constant 104 : index
    %c0_59 = arith.constant 0 : index
    %85 = vector.load %arg11[%c104, %c0_59] : memref<216x64xf32, #tpu.memory_space<vmem>>, vector<8x64xf32>
    tpu.vector_store %arg11[%c104, %c0_59], %84 {strides = array<i32>} : memref<216x64xf32, #tpu.memory_space<vmem>>, vector<8x64xf32>,
    %c0_60 = arith.constant 0 : index
    %c129 = arith.constant 129 : index
    %86 = vector.load %arg10[%c0_60, %c129] : memref<8x320xf32, #tpu.memory_space<vmem>>, vector<8x64xf32>
    %c14 = arith.constant 14 : index
    %c0_61 = arith.constant 0 : index
    %87 = vector.load %arg4[%c14, %c0_61] : memref<27x64xf32, #tpu.memory_space<vmem>>, vector<1x64xf32>
    %88 = vector.broadcast %87 : vector<1x64xf32> to vector<8x64xf32>
    %89 = arith.mulf %86, %88 : vector<8x64xf32>
    %c112_62 = arith.constant 112 : index
    %c0_63 = arith.constant 0 : index
    %90 = vector.load %arg11[%c112_62, %c0_63] : memref<216x64xf32, #tpu.memory_space<vmem>>, vector<8x64xf32>
    tpu.vector_store %arg11[%c112_62, %c0_63], %89 {strides = array<i32>} : memref<216x64xf32, #tpu.memory_space<vmem>>, vector<8x64xf32>,
    %c0_64 = arith.constant 0 : index
    %c131 = arith.constant 131 : index
    %91 = vector.load %arg10[%c0_64, %c131] : memref<8x320xf32, #tpu.memory_space<vmem>>, vector<8x64xf32>
    %c15 = arith.constant 15 : index
    %c0_65 = arith.constant 0 : index
    %92 = vector.load %arg4[%c15, %c0_65] : memref<27x64xf32, #tpu.memory_space<vmem>>, vector<1x64xf32>
    %93 = vector.broadcast %92 : vector<1x64xf32> to vector<8x64xf32>
    %94 = arith.mulf %91, %93 : vector<8x64xf32>
    %c120 = arith.constant 120 : index
    %c0_66 = arith.constant 0 : index
    %95 = vector.load %arg11[%c120, %c0_66] : memref<216x64xf32, #tpu.memory_space<vmem>>, vector<8x64xf32>
    tpu.vector_store %arg11[%c120, %c0_66], %94 {strides = array<i32>} : memref<216x64xf32, #tpu.memory_space<vmem>>, vector<8x64xf32>,
    %c0_67 = arith.constant 0 : index
    %c132 = arith.constant 132 : index
    %96 = vector.load %arg10[%c0_67, %c132] : memref<8x320xf32, #tpu.memory_space<vmem>>, vector<8x64xf32>
    %c16_68 = arith.constant 16 : index
    %c0_69 = arith.constant 0 : index
    %97 = vector.load %arg4[%c16_68, %c0_69] : memref<27x64xf32, #tpu.memory_space<vmem>>, vector<1x64xf32>
    %98 = vector.broadcast %97 : vector<1x64xf32> to vector<8x64xf32>
    %99 = arith.mulf %96, %98 : vector<8x64xf32>
    %c128_70 = arith.constant 128 : index
    %c0_71 = arith.constant 0 : index
    %100 = vector.load %arg11[%c128_70, %c0_71] : memref<216x64xf32, #tpu.memory_space<vmem>>, vector<8x64xf32>
    tpu.vector_store %arg11[%c128_70, %c0_71], %99 {strides = array<i32>} : memref<216x64xf32, #tpu.memory_space<vmem>>, vector<8x64xf32>,
    %c0_72 = arith.constant 0 : index
    %c133 = arith.constant 133 : index
    %101 = vector.load %arg10[%c0_72, %c133] : memref<8x320xf32, #tpu.memory_space<vmem>>, vector<8x64xf32>
    %c17 = arith.constant 17 : index
    %c0_73 = arith.constant 0 : index
    %102 = vector.load %arg4[%c17, %c0_73] : memref<27x64xf32, #tpu.memory_space<vmem>>, vector<1x64xf32>
    %103 = vector.broadcast %102 : vector<1x64xf32> to vector<8x64xf32>
    %104 = arith.mulf %101, %103 : vector<8x64xf32>
    %c136 = arith.constant 136 : index
    %c0_74 = arith.constant 0 : index
    %105 = vector.load %arg11[%c136, %c0_74] : memref<216x64xf32, #tpu.memory_space<vmem>>, vector<8x64xf32>
    tpu.vector_store %arg11[%c136, %c0_74], %104 {strides = array<i32>} : memref<216x64xf32, #tpu.memory_space<vmem>>, vector<8x64xf32>,
    %c0_75 = arith.constant 0 : index
    %c139 = arith.constant 139 : index
    %106 = vector.load %arg10[%c0_75, %c139] : memref<8x320xf32, #tpu.memory_space<vmem>>, vector<8x64xf32>
    %c18 = arith.constant 18 : index
    %c0_76 = arith.constant 0 : index
    %107 = vector.load %arg4[%c18, %c0_76] : memref<27x64xf32, #tpu.memory_space<vmem>>, vector<1x64xf32>
    %108 = vector.broadcast %107 : vector<1x64xf32> to vector<8x64xf32>
    %109 = arith.mulf %106, %108 : vector<8x64xf32>
    %c144 = arith.constant 144 : index
    %c0_77 = arith.constant 0 : index
    %110 = vector.load %arg11[%c144, %c0_77] : memref<216x64xf32, #tpu.memory_space<vmem>>, vector<8x64xf32>
    tpu.vector_store %arg11[%c144, %c0_77], %109 {strides = array<i32>} : memref<216x64xf32, #tpu.memory_space<vmem>>, vector<8x64xf32>,
    %c0_78 = arith.constant 0 : index
    %c140 = arith.constant 140 : index
    %111 = vector.load %arg10[%c0_78, %c140] : memref<8x320xf32, #tpu.memory_space<vmem>>, vector<8x64xf32>
    %c19 = arith.constant 19 : index
    %c0_79 = arith.constant 0 : index
    %112 = vector.load %arg4[%c19, %c0_79] : memref<27x64xf32, #tpu.memory_space<vmem>>, vector<1x64xf32>
    %113 = vector.broadcast %112 : vector<1x64xf32> to vector<8x64xf32>
    %114 = arith.mulf %111, %113 : vector<8x64xf32>
    %c152 = arith.constant 152 : index
    %c0_80 = arith.constant 0 : index
    %115 = vector.load %arg11[%c152, %c0_80] : memref<216x64xf32, #tpu.memory_space<vmem>>, vector<8x64xf32>
    tpu.vector_store %arg11[%c152, %c0_80], %114 {strides = array<i32>} : memref<216x64xf32, #tpu.memory_space<vmem>>, vector<8x64xf32>,
    %c0_81 = arith.constant 0 : index
    %c141 = arith.constant 141 : index
    %116 = vector.load %arg10[%c0_81, %c141] : memref<8x320xf32, #tpu.memory_space<vmem>>, vector<8x64xf32>
    %c20 = arith.constant 20 : index
    %c0_82 = arith.constant 0 : index
    %117 = vector.load %arg4[%c20, %c0_82] : memref<27x64xf32, #tpu.memory_space<vmem>>, vector<1x64xf32>
    %118 = vector.broadcast %117 : vector<1x64xf32> to vector<8x64xf32>
    %119 = arith.mulf %116, %118 : vector<8x64xf32>
    %c160 = arith.constant 160 : index
    %c0_83 = arith.constant 0 : index
    %120 = vector.load %arg11[%c160, %c0_83] : memref<216x64xf32, #tpu.memory_space<vmem>>, vector<8x64xf32>
    tpu.vector_store %arg11[%c160, %c0_83], %119 {strides = array<i32>} : memref<216x64xf32, #tpu.memory_space<vmem>>, vector<8x64xf32>,
    %c0_84 = arith.constant 0 : index
    %c143 = arith.constant 143 : index
    %121 = vector.load %arg10[%c0_84, %c143] : memref<8x320xf32, #tpu.memory_space<vmem>>, vector<8x64xf32>
    %c21 = arith.constant 21 : index
    %c0_85 = arith.constant 0 : index
    %122 = vector.load %arg4[%c21, %c0_85] : memref<27x64xf32, #tpu.memory_space<vmem>>, vector<1x64xf32>
    %123 = vector.broadcast %122 : vector<1x64xf32> to vector<8x64xf32>
    %124 = arith.mulf %121, %123 : vector<8x64xf32>
    %c168 = arith.constant 168 : index
    %c0_86 = arith.constant 0 : index
    %125 = vector.load %arg11[%c168, %c0_86] : memref<216x64xf32, #tpu.memory_space<vmem>>, vector<8x64xf32>
    tpu.vector_store %arg11[%c168, %c0_86], %124 {strides = array<i32>} : memref<216x64xf32, #tpu.memory_space<vmem>>, vector<8x64xf32>,
    %c0_87 = arith.constant 0 : index
    %c144_88 = arith.constant 144 : index
    %126 = vector.load %arg10[%c0_87, %c144_88] : memref<8x320xf32, #tpu.memory_space<vmem>>, vector<8x64xf32>
    %c22 = arith.constant 22 : index
    %c0_89 = arith.constant 0 : index
    %127 = vector.load %arg4[%c22, %c0_89] : memref<27x64xf32, #tpu.memory_space<vmem>>, vector<1x64xf32>
    %128 = vector.broadcast %127 : vector<1x64xf32> to vector<8x64xf32>
    %129 = arith.mulf %126, %128 : vector<8x64xf32>
    %c176 = arith.constant 176 : index
    %c0_90 = arith.constant 0 : index
    %130 = vector.load %arg11[%c176, %c0_90] : memref<216x64xf32, #tpu.memory_space<vmem>>, vector<8x64xf32>
    tpu.vector_store %arg11[%c176, %c0_90], %129 {strides = array<i32>} : memref<216x64xf32, #tpu.memory_space<vmem>>, vector<8x64xf32>,
    %c0_91 = arith.constant 0 : index
    %c145 = arith.constant 145 : index
    %131 = vector.load %arg10[%c0_91, %c145] : memref<8x320xf32, #tpu.memory_space<vmem>>, vector<8x64xf32>
    %c23 = arith.constant 23 : index
    %c0_92 = arith.constant 0 : index
    %132 = vector.load %arg4[%c23, %c0_92] : memref<27x64xf32, #tpu.memory_space<vmem>>, vector<1x64xf32>
    %133 = vector.broadcast %132 : vector<1x64xf32> to vector<8x64xf32>
    %134 = arith.mulf %131, %133 : vector<8x64xf32>
    %c184 = arith.constant 184 : index
    %c0_93 = arith.constant 0 : index
    %135 = vector.load %arg11[%c184, %c0_93] : memref<216x64xf32, #tpu.memory_space<vmem>>, vector<8x64xf32>
    tpu.vector_store %arg11[%c184, %c0_93], %134 {strides = array<i32>} : memref<216x64xf32, #tpu.memory_space<vmem>>, vector<8x64xf32>,
    %c0_94 = arith.constant 0 : index
    %c147 = arith.constant 147 : index
    %136 = vector.load %arg10[%c0_94, %c147] : memref<8x320xf32, #tpu.memory_space<vmem>>, vector<8x64xf32>
    %c24_95 = arith.constant 24 : index
    %c0_96 = arith.constant 0 : index
    %137 = vector.load %arg4[%c24_95, %c0_96] : memref<27x64xf32, #tpu.memory_space<vmem>>, vector<1x64xf32>
    %138 = vector.broadcast %137 : vector<1x64xf32> to vector<8x64xf32>
    %139 = arith.mulf %136, %138 : vector<8x64xf32>
    %c192 = arith.constant 192 : index
    %c0_97 = arith.constant 0 : index
    %140 = vector.load %arg11[%c192, %c0_97] : memref<216x64xf32, #tpu.memory_space<vmem>>, vector<8x64xf32>
    tpu.vector_store %arg11[%c192, %c0_97], %139 {strides = array<i32>} : memref<216x64xf32, #tpu.memory_space<vmem>>, vector<8x64xf32>,
    %c0_98 = arith.constant 0 : index
    %c148 = arith.constant 148 : index
    %141 = vector.load %arg10[%c0_98, %c148] : memref<8x320xf32, #tpu.memory_space<vmem>>, vector<8x64xf32>
    %c25 = arith.constant 25 : index
    %c0_99 = arith.constant 0 : index
    %142 = vector.load %arg4[%c25, %c0_99] : memref<27x64xf32, #tpu.memory_space<vmem>>, vector<1x64xf32>
    %143 = vector.broadcast %142 : vector<1x64xf32> to vector<8x64xf32>
    %144 = arith.mulf %141, %143 : vector<8x64xf32>
    %c200 = arith.constant 200 : index
    %c0_100 = arith.constant 0 : index
    %145 = vector.load %arg11[%c200, %c0_100] : memref<216x64xf32, #tpu.memory_space<vmem>>, vector<8x64xf32>
    tpu.vector_store %arg11[%c200, %c0_100], %144 {strides = array<i32>} : memref<216x64xf32, #tpu.memory_space<vmem>>, vector<8x64xf32>,
    %c0_101 = arith.constant 0 : index
    %c149 = arith.constant 149 : index
    %146 = vector.load %arg10[%c0_101, %c149] : memref<8x320xf32, #tpu.memory_space<vmem>>, vector<8x64xf32>
    %c26 = arith.constant 26 : index
    %c0_102 = arith.constant 0 : index
    %147 = vector.load %arg4[%c26, %c0_102] : memref<27x64xf32, #tpu.memory_space<vmem>>, vector<1x64xf32>
    %148 = vector.broadcast %147 : vector<1x64xf32> to vector<8x64xf32>
    %149 = arith.mulf %146, %148 : vector<8x64xf32>
    %c208 = arith.constant 208 : index
    %c0_103 = arith.constant 0 : index
    %150 = vector.load %arg11[%c208, %c0_103] : memref<216x64xf32, #tpu.memory_space<vmem>>, vector<8x64xf32>
    tpu.vector_store %arg11[%c208, %c0_103], %149 {strides = array<i32>} : memref<216x64xf32, #tpu.memory_space<vmem>>, vector<8x64xf32>,
    %c0_104 = arith.constant 0 : index
    %c0_105 = arith.constant 0 : index
    %151 = vector.load %arg7[%c0_104, %c0_105] : memref<8x216xf32, #tpu.memory_space<vmem>>, vector<8x216xf32>
    %c0_106 = arith.constant 0 : index
    %c0_107 = arith.constant 0 : index
    %152 = vector.load %arg11[%c0_106, %c0_107] : memref<216x64xf32, #tpu.memory_space<vmem>>, vector<216x64xf32>
    %cst_108 = arith.constant dense<0.000000e+00> : vector<8x64xf32>
    %153 = tpu.matmul %151, %152, %cst_108 {dimension_numbers = #tpu.dot_dimension_numbers<[1], [0], [0], [1], [0, 0, 1, 1], [], []>} : vector<8x216xf32>, vector<216x64xf32>, vector<8x64xf32> -> vector<8x64xf32>
    %c0_109 = arith.constant 0 : index
    %c0_110 = arith.constant 0 : index
    %154 = vector.load %arg8[%c0_109, %c0_110] : memref<8x1xf32, #tpu.memory_space<vmem>>, vector<8x1xf32>
    %155 = vector.broadcast %154 : vector<8x1xf32> to vector<8x64xf32>
    %156 = arith.addf %153, %155 : vector<8x64xf32>
    %c0_111 = arith.constant 0 : index
    %c0_112 = arith.constant 0 : index
    %c0_113 = arith.constant 0 : index
    %157 = vector.load %arg9[%c0_111, %c0_112, %c0_113] : memref<1x8x64xf32, #tpu.memory_space<vmem>>, vector<1x8x64xf32>
    %158 = vector.shape_cast %157 : vector<1x8x64xf32> to vector<8x64xf32>
    %159 = vector.shape_cast %156 : vector<8x64xf32> to vector<1x8x64xf32>
    tpu.vector_store %arg9[%c0_111, %c0_112, %c0_113], %159 {strides = array<i32>} : memref<1x8x64xf32, #tpu.memory_space<vmem>>, vector<1x8x64xf32>,
    return
  }
  func.func @transform_0(%arg0: i32) -> (i32, i32, i32) {
    %c0_i32 = arith.constant 0 : i32
    %c0_i32_0 = arith.constant 0 : i32
    %c0_i32_1 = arith.constant 0 : i32
    return %arg0, %c0_i32, %c0_i32_0 : i32, i32, i32
  }
  func.func @transform_1(%arg0: i32) -> (i32, i32, i32) {
    %c0_i32 = arith.constant 0 : i32
    %c0_i32_0 = arith.constant 0 : i32
    %c0_i32_1 = arith.constant 0 : i32
    return %arg0, %c0_i32, %c0_i32_0 : i32, i32, i32
  }
  func.func @transform_2(%arg0: i32) -> (i32, i32) {
    %c0_i32 = arith.constant 0 : i32
    %c0_i32_0 = arith.constant 0 : i32
    %c0_i32_1 = arith.constant 0 : i32
    return %c0_i32, %c0_i32_0 : i32, i32
  }
  func.func @transform_3(%arg0: i32) -> (i32, i32) {
    %c0_i32 = arith.constant 0 : i32
    %c0_i32_0 = arith.constant 0 : i32
    %c0_i32_1 = arith.constant 0 : i32
    return %c0_i32, %c0_i32_0 : i32, i32
  }
  func.func @transform_4(%arg0: i32) -> (i32, i32) {
    %c0_i32 = arith.constant 0 : i32
    %c0_i32_0 = arith.constant 0 : i32
    %c0_i32_1 = arith.constant 0 : i32
    return %c0_i32, %c0_i32_0 : i32, i32
  }
  func.func @transform_5(%arg0: i32) -> (i32, i32) {
    %c0_i32 = arith.constant 0 : i32
    %c0_i32_0 = arith.constant 0 : i32
    %c0_i32_1 = arith.constant 0 : i32
    return %c0_i32, %c0_i32_0 : i32, i32
  }
  func.func @transform_6(%arg0: i32) -> (i32, i32) {
    %c0_i32 = arith.constant 0 : i32
    %c0_i32_0 = arith.constant 0 : i32
    %c0_i32_1 = arith.constant 0 : i32
    return %c0_i32, %c0_i32_0 : i32, i32
  }
  func.func @transform_7(%arg0: i32) -> (i32, i32) {
    %c0_i32 = arith.constant 0 : i32
    %c0_i32_0 = arith.constant 0 : i32
    %c0_i32_1 = arith.constant 0 : i32
    return %c0_i32, %c0_i32_0 : i32, i32
  }
  func.func @transform_8(%arg0: i32) -> (i32, i32, i32) {
    %c0_i32 = arith.constant 0 : i32
    %c0_i32_0 = arith.constant 0 : i32
    %c0_i32_1 = arith.constant 0 : i32
    return %arg0, %c0_i32, %c0_i32_0 : i32, i32, i32
  }
}

</mosaic_0001>

<llo_original>
// kernel: tpu_custom_call.1
$region0: #{tpu_custom_call.1}
  #allocation0 [shape = 'u32[]', space=smem, size = 0x4, offset = 0x4, fixed_abs, tag = 'smem constant byte address 0x4 - core index']
  #allocation1 [shape = 'u32[72,128]{1,0:T(1,128)}', space=vmem, size = 0x9000, scoped, tag = 'internal scratch']
  #allocation2 [shape = 'f32[8,320]{1,0:T(8,128)}', space=vmem, size = 0x3000, scoped, tag = 'scratch operand']
  #allocation3 [shape = 'f32[216,64]{1,0:T(8,128)}', space=vmem, size = 0x1b000, scoped, tag = 'scratch operand']
  %s0 = inlined_call_operand.vmem [shape: f32[1,16,8], index: 0, kind: input, shape index: {}]
  %s1 = inlined_call_operand.vmem [shape: f32[1,8,64], index: 1, kind: input, shape index: {}]
  %s2 = inlined_call_operand.hbm [shape: f32[8,64], index: 2, kind: input, shape index: {}]
  %s3 = inlined_call_operand.vmem [shape: f32[27,64], index: 3, kind: input, shape index: {}]
  %s4 = inlined_call_operand.hbm [shape: f32[8,16], index: 4, kind: input, shape index: {}]
  %s5 = inlined_call_operand.vmem [shape: f32[8,1], index: 5, kind: input, shape index: {}]
  %s6 = inlined_call_operand.hbm [shape: f32[8,216], index: 6, kind: input, shape index: {}]
  %s7 = inlined_call_operand.vmem [shape: f32[8,1], index: 7, kind: input, shape index: {}]
  %s8 = inlined_call_operand.hbm [shape: f32[1,8,64], index: 8, kind: output, shape index: {}]
  %s9 = sld [smem:[#allocation0]]
  $region58: #{tpu_custom_call.1} parent=0
    _
  %s11 = ssub.s32 1, %s9
  %s12 = scalar_select 0, %s11, %s9
  $region1: #{tpu_custom_call.1} parent=0
    #allocation4 [shape = 'u8[4096]{0}', space=vmem, size = 0x1000, scoped, tag = 'input window, operand 2, single buffered']
    #allocation5 [shape = 's32[1]{0}', space=sflag, size = 0x4, scoped, tag = 'scoped memory for tpu_custom_call.1']
    #allocation6 [shape = 's32[1]{0}', space=sflag, size = 0x4, scoped, tag = 'scoped memory for tpu_custom_call.1']
    #allocation7 [shape = 'u8[4096]{0}', space=vmem, size = 0x1000, scoped, tag = 'input window, operand 4, single buffered']
    #allocation8 [shape = 's32[1]{0}', space=sflag, size = 0x4, scoped, tag = 'scoped memory for tpu_custom_call.1']
    #allocation9 [shape = 'u8[8192]{0}', space=vmem, size = 0x2000, scoped, tag = 'input window, operand 6, single buffered']
    #allocation10 [shape = 'u8[4096]{0}', space=vmem, size = 0x1000, scoped, tag = 'output window, operand 0, single buffered']
    %13 = vsyncpa [#allocation5], 0
    %14 = vsyncpa [#allocation8], 0
    %15 = vsyncpa [#allocation6], 0
    // Predicated region
    $region2: #{tpu_custom_call.1} parent=1 // pred_check
      _
    $region3: #{tpu_custom_call.1} parent=1 // pred_check_branch
      %17 = sbr.rel (0) target = $region5
    $region4: #{tpu_custom_call.1} parent=1 // pred_region
      _
    $region5: #{tpu_custom_call.1} parent=1 // pred_fallthru
      _
    // Predicated region
    $region6: #{tpu_custom_call.1} parent=1 // pred_check
      _
    $region7: #{tpu_custom_call.1} parent=1 // pred_check_branch
      %19 = sbr.rel (0) target = $region9
    $region8: #{tpu_custom_call.1} parent=1 // pred_region
      _
    $region9: #{tpu_custom_call.1} parent=1 // pred_fallthru
      _
    // Predicated region
    $region10: #{tpu_custom_call.1} parent=1 // pred_check
      _
    $region11: #{tpu_custom_call.1} parent=1 // pred_check_branch
      %21 = sbr.rel (0) target = $region13
    $region12: #{tpu_custom_call.1} parent=1 // pred_region
      %23 = vsyncadd [#allocation5], 0
      %s25 = sshll.u32 %s2, 4
      %s26 = int_to_ptr.hbm [resolvable:$true] %s25
      %s27 = sshll.u32 [#allocation4], 4
      %s28 = int_to_ptr.vmem [resolvable:$true] %s27
      %30 = dma.hbm_to_vmem [thread:$0]  %s26, 128, %s28, [#allocation5]
    $region13: #{tpu_custom_call.1} parent=1 // pred_fallthru
      _
    // Predicated region
    $region14: #{tpu_custom_call.1} parent=1 // pred_check
      _
    $region15: #{tpu_custom_call.1} parent=1 // pred_check_branch
      %32 = sbr.rel (0) target = $region17
    $region16: #{tpu_custom_call.1} parent=1 // pred_region
      _
    $region17: #{tpu_custom_call.1} parent=1 // pred_fallthru
      _
    // Predicated region
    $region18: #{tpu_custom_call.1} parent=1 // pred_check
      _
    $region19: #{tpu_custom_call.1} parent=1 // pred_check_branch
      %34 = sbr.rel (0) target = $region21
    $region20: #{tpu_custom_call.1} parent=1 // pred_region
      %36 = vsyncadd [#allocation8], 0
      %s38 = sshll.u32 %s4, 4
      %s39 = int_to_ptr.hbm [resolvable:$true] %s38
      %s40 = sshll.u32 [#allocation7], 4
      %s41 = int_to_ptr.vmem [resolvable:$true] %s40
      %43 = dma.hbm_to_vmem [thread:$0]  %s39, 128, %s41, [#allocation8]
    $region21: #{tpu_custom_call.1} parent=1 // pred_fallthru
      _
    // Predicated region
    $region22: #{tpu_custom_call.1} parent=1 // pred_check
      _
    $region23: #{tpu_custom_call.1} parent=1 // pred_check_branch
      %45 = sbr.rel (0) target = $region25
    $region24: #{tpu_custom_call.1} parent=1 // pred_region
      _
    $region25: #{tpu_custom_call.1} parent=1 // pred_fallthru
      _
    // Predicated region
    $region26: #{tpu_custom_call.1} parent=1 // pred_check
      _
    $region27: #{tpu_custom_call.1} parent=1 // pred_check_branch
      %47 = sbr.rel (0) target = $region29
    $region28: #{tpu_custom_call.1} parent=1 // pred_region
      %49 = vsyncadd [#allocation8], 0
      %s51 = sshll.u32 %s6, 4
      %s52 = int_to_ptr.hbm [resolvable:$true] %s51
      %s53 = sshll.u32 [#allocation9], 4
      %s54 = int_to_ptr.vmem [resolvable:$true] %s53
      %56 = dma.hbm_to_vmem [thread:$0]  %s52, 256, %s54, [#allocation8]
    $region29: #{tpu_custom_call.1} parent=1 // pred_fallthru
      _
    // Predicated region
    $region30: #{tpu_custom_call.1} parent=1 // pred_check
      _
    $region31: #{tpu_custom_call.1} parent=1 // pred_check_branch
      %58 = sbr.rel (0) target = $region33
    $region32: #{tpu_custom_call.1} parent=1 // pred_region
      _
    $region33: #{tpu_custom_call.1} parent=1 // pred_fallthru
      _
    // Predicated region
    $region34: #{tpu_custom_call.1} parent=1 // pred_check
      _
    $region35: #{tpu_custom_call.1} parent=1 // pred_check_branch
      %60 = sbr.rel (0) target = $region37
    $region36: #{tpu_custom_call.1} parent=1 // pred_region
      %62 = dma.done [#allocation5], 128
    $region37: #{tpu_custom_call.1} parent=1 // pred_fallthru
      _
    // Predicated region
    $region38: #{tpu_custom_call.1} parent=1 // pred_check
      _
    $region39: #{tpu_custom_call.1} parent=1 // pred_check_branch
      %64 = sbr.rel (0) target = $region41
    $region40: #{tpu_custom_call.1} parent=1 // pred_region
      %66 = dma.done [#allocation8], 128
    $region41: #{tpu_custom_call.1} parent=1 // pred_fallthru
      _
    // Predicated region
    $region42: #{tpu_custom_call.1} parent=1 // pred_check
      _
    $region43: #{tpu_custom_call.1} parent=1 // pred_check_branch
      %68 = sbr.rel (0) target = $region45
    $region44: #{tpu_custom_call.1} parent=1 // pred_region
      %70 = dma.done [#allocation8], 256
    $region45: #{tpu_custom_call.1} parent=1 // pred_fallthru
      _
    %p71 = scmp.eq.s32.totalorder 0, 0
    // Predicated region
    $region46: #{tpu_custom_call.1} parent=1 // pred_check
      %p72 = pneg %p71
    $region47: #{tpu_custom_call.1} parent=1 // pred_check_branch
      %74 = sbr.rel (%p72) target = $region49
    $region48: #{tpu_custom_call.1} parent=1 // pred_region
      %75 = vst [vmem:[#allocation2] sm:$0xff] 0.0
      %vm76 = vcmask 1048064
      %77 = vst.msk [vmem:[#allocation2 + $0x8] sm:$0xff] %vm76, 0.0
      %vm78 = vcmask 523264
      %79 = vst.msk [vmem:[#allocation2 + $0x10] sm:$0xff] %vm78, 0.0
    $region49: #{tpu_custom_call.1} parent=1 // pred_fallthru
      _
    %v80 = vld [vmem:[#allocation7] sm:$0xff]
    %v81 = vld [vmem:[%s0] sm:$0xff]
    %v82 = vld [vmem:[%s0 + $0x8] sm:$0xff]
    %v83 = vld [vmem:[%s5] sm:$0xff]
    %85 = vset.pattern.permute.xlu0 0
    %86 = vperm.xlu0 %85, %v83
    %v87 = vpop.permute.xlu0 %86
    %vm89 = vcmask 130048
    %v91 = vsel %vm89, %v80, 0
    %93 = vmatpush.msra.mxu0 0.0
    %94 = vmatpush.msra.mxu0 0.0
    %95 = vmatpush.msra.mxu0 0.0
    %96 = vmatpush.msra.mxu0 0.0
    %97 = vmatpush.msra.mxu0 0.0
    %98 = vmatpush.msra.mxu0 0.0
    %99 = vmatpush.msra.mxu0 0.0
    %100 = vmatpush.msra.mxu0 0.0
    %101 = vmatpush.msra.mxu0 0.0
    %102 = vmatpush.msra.mxu0 0.0
    %103 = vmatpush.msra.mxu0 0.0
    %104 = vmatpush.msra.mxu0 0.0
    %105 = vmatpush.msra.mxu0 0.0
    %106 = vmatpush.msra.mxu0 0.0
    %107 = vmatpush.msra.mxu0 %v82
    %108 = vmatpush.msra.mxu0 %v81
    %109 = vmatmul.f32.gmra.mxu0 %v91
    %v110 = vpop.f32.mrf.mxu0
    %v111 = vadd.f32 %v87, %v110
    %112 = vdwg.mxu0
    %v113 = vld [vmem:[#allocation4] sm:$0xff]
    %v114 = vld [vmem:[%s1] sm:$0xff]
    %vm115 = vcmask 64512
    %v117 = vsel %vm115, %v111, 0
    %119 = vmatpush.msra.mxu0 0.0
    %120 = vmatpush.msra.mxu0 0.0
    %121 = vmatpush.msra.mxu0 0.0
    %122 = vmatpush.msra.mxu0 0.0
    %123 = vmatpush.msra.mxu0 0.0
    %124 = vmatpush.msra.mxu0 0.0
    %125 = vmatpush.msra.mxu0 0.0
    %126 = vmatpush.msra.mxu0 0.0
    %127 = vmatpush.msra.mxu0 0.0
    %128 = vmatpush.msra.mxu0 0.0
    %129 = vmatpush.msra.mxu0 0.0
    %130 = vmatpush.msra.mxu0 0.0
    %131 = vmatpush.msra.mxu0 0.0
    %132 = vmatpush.msra.mxu0 0.0
    %133 = vmatpush.msra.mxu0 0.0
    %134 = vmatpush.msra.mxu0 %v113
    %135 = vmatmul.f32.gmra.mxu0 %v117
    %v136 = vpop.f32.mrf.mxu0
    %v137 = vadd.f32 %v114, %v136
    %138 = vdwg.mxu0
    %vm139 = vcmask 523264
    %140 = vst.msk [vmem:[#allocation2 + $0x8] sm:$0xff] %vm139, %v137
    %v141 = vld [vmem:[#allocation2] sm:$0xff]
    %v142 = vld [vmem:[#allocation2 + $0x8] sm:$0xff]
    %v143 = vld [vmem:[%s3] sm:$0x1]
    %v144 = vperm.slane %v143, 0
    %146 = vrot.lane.b32.xlu0 %v144, 107
    %v147 = vpop.permute.xlu0 %146
    %v149 = vmul.f32 %v141, %v147
    %v150 = vmul.f32 %v142, %v147
    %153 = vrot.lane.b32.xlu0 %v149, 21
    %v154 = vpop.permute.xlu0 %153
    %155 = vrot.lane.b32.xlu0 %v150, 21
    %v156 = vpop.permute.xlu0 %155
    %vm157 = vcmask 171008
    %v158 = vsel %vm157, %v154, %v156
    %160 = vst.msk [vmem:[#allocation3] sm:$0xff] %vm139, %v158
    %v161 = vld [vmem:[#allocation2] sm:$0xff]
    %v162 = vld [vmem:[#allocation2 + $0x8] sm:$0xff]
    %v163 = vld [vmem:[%s3 + $0x1] sm:$0x1]
    %v164 = vperm.slane %v163, 0
    %166 = vrot.lane.b32.xlu0 %v164, 108
    %v167 = vpop.permute.xlu0 %166
    %v169 = vmul.f32 %v161, %v167
    %v170 = vmul.f32 %v162, %v167
    %173 = vrot.lane.b32.xlu0 %v169, 20
    %v174 = vpop.permute.xlu0 %173
    %175 = vrot.lane.b32.xlu0 %v170, 20
    %v176 = vpop.permute.xlu0 %175
    %vm177 = vcmask 162816
    %v178 = vsel %vm177, %v174, %v176
    %180 = vst.msk [vmem:[#allocation3 + $0x8] sm:$0xff] %vm139, %v178
    %v181 = vld [vmem:[#allocation2] sm:$0xff]
    %v182 = vld [vmem:[#allocation2 + $0x8] sm:$0xff]
    %v183 = vld [vmem:[%s3 + $0x2] sm:$0x1]
    %v184 = vperm.slane %v183, 0
    %186 = vrot.lane.b32.xlu0 %v184, 109
    %v187 = vpop.permute.xlu0 %186
    %v189 = vmul.f32 %v181, %v187
    %v190 = vmul.f32 %v182, %v187
    %193 = vrot.lane.b32.xlu0 %v189, 19
    %v194 = vpop.permute.xlu0 %193
    %195 = vrot.lane.b32.xlu0 %v190, 19
    %v196 = vpop.permute.xlu0 %195
    %vm197 = vcmask 154624
    %v198 = vsel %vm197, %v194, %v196
    %200 = vst.msk [vmem:[#allocation3 + $0x10] sm:$0xff] %vm139, %v198
    %v201 = vld [vmem:[#allocation2] sm:$0xff]
    %v202 = vld [vmem:[#allocation2 + $0x8] sm:$0xff]
    %v203 = vld [vmem:[%s3 + $0x3] sm:$0x1]
    %v204 = vperm.slane %v203, 0
    %206 = vrot.lane.b32.xlu0 %v204, 111
    %v207 = vpop.permute.xlu0 %206
    %v209 = vmul.f32 %v201, %v207
    %v210 = vmul.f32 %v202, %v207
    %213 = vrot.lane.b32.xlu0 %v209, 17
    %v214 = vpop.permute.xlu0 %213
    %215 = vrot.lane.b32.xlu0 %v210, 17
    %v216 = vpop.permute.xlu0 %215
    %vm217 = vcmask 138240
    %v218 = vsel %vm217, %v214, %v216
    %220 = vst.msk [vmem:[#allocation3 + $0x18] sm:$0xff] %vm139, %v218
    %v221 = vld [vmem:[#allocation2] sm:$0xff]
    %v222 = vld [vmem:[#allocation2 + $0x8] sm:$0xff]
    %v223 = vld [vmem:[%s3 + $0x4] sm:$0x1]
    %v224 = vperm.slane %v223, 0
    %226 = vrot.lane.b32.xlu0 %v224, 112
    %v227 = vpop.permute.xlu0 %226
    %v229 = vmul.f32 %v221, %v227
    %v230 = vmul.f32 %v222, %v227
    %233 = vrot.lane.b32.xlu0 %v229, 16
    %v234 = vpop.permute.xlu0 %233
    %235 = vrot.lane.b32.xlu0 %v230, 16
    %v236 = vpop.permute.xlu0 %235
    %v237 = vsel %vm89, %v234, %v236
    %239 = vst.msk [vmem:[#allocation3 + $0x20] sm:$0xff] %vm139, %v237
    %v240 = vld [vmem:[#allocation2] sm:$0xff]
    %v241 = vld [vmem:[#allocation2 + $0x8] sm:$0xff]
    %v242 = vld [vmem:[%s3 + $0x5] sm:$0x1]
    %v243 = vperm.slane %v242, 0
    %245 = vrot.lane.b32.xlu0 %v243, 113
    %v246 = vpop.permute.xlu0 %245
    %v248 = vmul.f32 %v240, %v246
    %v249 = vmul.f32 %v241, %v246
    %252 = vrot.lane.b32.xlu0 %v248, 15
    %v253 = vpop.permute.xlu0 %252
    %254 = vrot.lane.b32.xlu0 %v249, 15
    %v255 = vpop.permute.xlu0 %254
    %vm256 = vcmask 121856
    %v257 = vsel %vm256, %v253, %v255
    %259 = vst.msk [vmem:[#allocation3 + $0x28] sm:$0xff] %vm139, %v257
    %v260 = vld [vmem:[#allocation2] sm:$0xff]
    %v261 = vld [vmem:[#allocation2 + $0x8] sm:$0xff]
    %v262 = vld [vmem:[%s3 + $0x6] sm:$0x1]
    %v263 = vperm.slane %v262, 0
    %265 = vrot.lane.b32.xlu0 %v263, 115
    %v266 = vpop.permute.xlu0 %265
    %v268 = vmul.f32 %v260, %v266
    %v269 = vmul.f32 %v261, %v266
    %272 = vrot.lane.b32.xlu0 %v268, 13
    %v273 = vpop.permute.xlu0 %272
    %274 = vrot.lane.b32.xlu0 %v269, 13
    %v275 = vpop.permute.xlu0 %274
    %vm276 = vcmask 105472
    %v277 = vsel %vm276, %v273, %v275
    %279 = vst.msk [vmem:[#allocation3 + $0x30] sm:$0xff] %vm139, %v277
    %v280 = vld [vmem:[#allocation2] sm:$0xff]
    %v281 = vld [vmem:[#allocation2 + $0x8] sm:$0xff]
    %v282 = vld [vmem:[%s3 + $0x7] sm:$0x1]
    %v283 = vperm.slane %v282, 0
    %285 = vrot.lane.b32.xlu0 %v283, 116
    %v286 = vpop.permute.xlu0 %285
    %v288 = vmul.f32 %v280, %v286
    %v289 = vmul.f32 %v281, %v286
    %292 = vrot.lane.b32.xlu0 %v288, 12
    %v293 = vpop.permute.xlu0 %292
    %294 = vrot.lane.b32.xlu0 %v289, 12
    %v295 = vpop.permute.xlu0 %294
    %vm296 = vcmask 97280
    %v297 = vsel %vm296, %v293, %v295
    %299 = vst.msk [vmem:[#allocation3 + $0x38] sm:$0xff] %vm139, %v297
    %v300 = vld [vmem:[#allocation2] sm:$0xff]
    %v301 = vld [vmem:[#allocation2 + $0x8] sm:$0xff]
    %v302 = vld [vmem:[%s3 + $0x8] sm:$0x1]
    %v303 = vperm.slane %v302, 0
    %305 = vrot.lane.b32.xlu0 %v303, 117
    %v306 = vpop.permute.xlu0 %305
    %v308 = vmul.f32 %v300, %v306
    %v309 = vmul.f32 %v301, %v306
    %312 = vrot.lane.b32.xlu0 %v308, 11
    %v313 = vpop.permute.xlu0 %312
    %314 = vrot.lane.b32.xlu0 %v309, 11
    %v315 = vpop.permute.xlu0 %314
    %vm316 = vcmask 89088
    %v317 = vsel %vm316, %v313, %v315
    %319 = vst.msk [vmem:[#allocation3 + $0x40] sm:$0xff] %vm139, %v317
    %v320 = vld [vmem:[#allocation2] sm:$0xff]
    %v321 = vld [vmem:[#allocation2 + $0x8] sm:$0xff]
    %v322 = vld [vmem:[%s3 + $0x9] sm:$0x1]
    %v323 = vperm.slane %v322, 0
    %325 = vrot.lane.b32.xlu0 %v323, 123
    %v326 = vpop.permute.xlu0 %325
    %v328 = vmul.f32 %v320, %v326
    %v329 = vmul.f32 %v321, %v326
    %332 = vrot.lane.b32.xlu0 %v328, 5
    %v333 = vpop.permute.xlu0 %332
    %334 = vrot.lane.b32.xlu0 %v329, 5
    %v335 = vpop.permute.xlu0 %334
    %vm336 = vcmask 39936
    %v337 = vsel %vm336, %v333, %v335
    %339 = vst.msk [vmem:[#allocation3 + $0x48] sm:$0xff] %vm139, %v337
    %v340 = vld [vmem:[#allocation2] sm:$0xff]
    %v341 = vld [vmem:[#allocation2 + $0x8] sm:$0xff]
    %v342 = vld [vmem:[%s3 + $0xa] sm:$0x1]
    %v343 = vperm.slane %v342, 0
    %345 = vrot.lane.b32.xlu0 %v343, 124
    %v346 = vpop.permute.xlu0 %345
    %v348 = vmul.f32 %v340, %v346
    %v349 = vmul.f32 %v341, %v346
    %352 = vrot.lane.b32.xlu0 %v348, 4
    %v353 = vpop.permute.xlu0 %352
    %354 = vrot.lane.b32.xlu0 %v349, 4
    %v355 = vpop.permute.xlu0 %354
    %vm356 = vcmask 31744
    %v357 = vsel %vm356, %v353, %v355
    %359 = vst.msk [vmem:[#allocation3 + $0x50] sm:$0xff] %vm139, %v357
    %v360 = vld [vmem:[#allocation2] sm:$0xff]
    %v361 = vld [vmem:[#allocation2 + $0x8] sm:$0xff]
    %v362 = vld [vmem:[%s3 + $0xb] sm:$0x1]
    %v363 = vperm.slane %v362, 0
    %365 = vrot.lane.b32.xlu0 %v363, 125
    %v366 = vpop.permute.xlu0 %365
    %v368 = vmul.f32 %v360, %v366
    %v369 = vmul.f32 %v361, %v366
    %372 = vrot.lane.b32.xlu0 %v368, 3
    %v373 = vpop.permute.xlu0 %372
    %374 = vrot.lane.b32.xlu0 %v369, 3
    %v375 = vpop.permute.xlu0 %374
    %vm376 = vcmask 23552
    %v377 = vsel %vm376, %v373, %v375
    %379 = vst.msk [vmem:[#allocation3 + $0x58] sm:$0xff] %vm139, %v377
    %v380 = vld [vmem:[#allocation2] sm:$0xff]
    %v381 = vld [vmem:[#allocation2 + $0x8] sm:$0xff]
    %v382 = vld [vmem:[%s3 + $0xc] sm:$0x1]
    %v383 = vperm.slane %v382, 0
    %385 = vrot.lane.b32.xlu0 %v383, 127
    %v386 = vpop.permute.xlu0 %385
    %v388 = vmul.f32 %v380, %v386
    %v389 = vmul.f32 %v381, %v386
    %392 = vrot.lane.b32.xlu0 %v388, 1
    %v393 = vpop.permute.xlu0 %392
    %394 = vrot.lane.b32.xlu0 %v389, 1
    %v395 = vpop.permute.xlu0 %394
    %vm396 = vcmask 7168
    %v397 = vsel %vm396, %v393, %v395
    %399 = vst.msk [vmem:[#allocation3 + $0x60] sm:$0xff] %vm139, %v397
    %v400 = vld [vmem:[#allocation2 + $0x8] sm:$0xff]
    %v401 = vld [vmem:[%s3 + $0xd] sm:$0x1]
    %v402 = vperm.slane %v401, 0
    %v403 = vmul.f32 %v400, %v402
    %404 = vst.msk [vmem:[#allocation3 + $0x68] sm:$0xff] %vm139, %v403
    %v405 = vld [vmem:[#allocation2 + $0x8] sm:$0xff]
    %v406 = vld [vmem:[%s3 + $0xe] sm:$0x1]
    %v407 = vperm.slane %v406, 0
    %409 = vrot.lane.b32.xlu0 %v407, 1
    %v410 = vpop.permute.xlu0 %409
    %v412 = vmul.f32 %v405, %v410
    %414 = vrot.lane.b32.xlu0 %v412, 127
    %v415 = vpop.permute.xlu0 %414
    %417 = vst.msk [vmem:[#allocation3 + $0x70] sm:$0xff] %vm139, %v415
    %v418 = vld [vmem:[#allocation2 + $0x8] sm:$0xff]
    %v419 = vld [vmem:[%s3 + $0xf] sm:$0x1]
    %v420 = vperm.slane %v419, 0
    %422 = vrot.lane.b32.xlu0 %v420, 3
    %v423 = vpop.permute.xlu0 %422
    %v425 = vmul.f32 %v418, %v423
    %427 = vrot.lane.b32.xlu0 %v425, 125
    %v428 = vpop.permute.xlu0 %427
    %430 = vst.msk [vmem:[#allocation3 + $0x78] sm:$0xff] %vm139, %v428
    %v431 = vld [vmem:[#allocation2 + $0x8] sm:$0xff]
    %v432 = vld [vmem:[%s3 + $0x10] sm:$0x1]
    %v433 = vperm.slane %v432, 0
    %435 = vrot.lane.b32.xlu0 %v433, 4
    %v436 = vpop.permute.xlu0 %435
    %v438 = vmul.f32 %v431, %v436
    %440 = vrot.lane.b32.xlu0 %v438, 124
    %v441 = vpop.permute.xlu0 %440
    %443 = vst.msk [vmem:[#allocation3 + $0x80] sm:$0xff] %vm139, %v441
    %v444 = vld [vmem:[#allocation2 + $0x8] sm:$0xff]
    %v445 = vld [vmem:[%s3 + $0x11] sm:$0x1]
    %v446 = vperm.slane %v445, 0
    %448 = vrot.lane.b32.xlu0 %v446, 5
    %v449 = vpop.permute.xlu0 %448
    %v451 = vmul.f32 %v444, %v449
    %453 = vrot.lane.b32.xlu0 %v451, 123
    %v454 = vpop.permute.xlu0 %453
    %456 = vst.msk [vmem:[#allocation3 + $0x88] sm:$0xff] %vm139, %v454
    %v457 = vld [vmem:[#allocation2 + $0x8] sm:$0xff]
    %v458 = vld [vmem:[%s3 + $0x12] sm:$0x1]
    %v459 = vperm.slane %v458, 0
    %461 = vrot.lane.b32.xlu0 %v459, 11
    %v462 = vpop.permute.xlu0 %461
    %v464 = vmul.f32 %v457, %v462
    %466 = vrot.lane.b32.xlu0 %v464, 117
    %v467 = vpop.permute.xlu0 %466
    %469 = vst.msk [vmem:[#allocation3 + $0x90] sm:$0xff] %vm139, %v467
    %v470 = vld [vmem:[#allocation2 + $0x8] sm:$0xff]
    %v471 = vld [vmem:[%s3 + $0x13] sm:$0x1]
    %v472 = vperm.slane %v471, 0
    %474 = vrot.lane.b32.xlu0 %v472, 12
    %v475 = vpop.permute.xlu0 %474
    %v477 = vmul.f32 %v470, %v475
    %479 = vrot.lane.b32.xlu0 %v477, 116
    %v480 = vpop.permute.xlu0 %479
    %482 = vst.msk [vmem:[#allocation3 + $0x98] sm:$0xff] %vm139, %v480
    %v483 = vld [vmem:[#allocation2 + $0x8] sm:$0xff]
    %v484 = vld [vmem:[%s3 + $0x14] sm:$0x1]
    %v485 = vperm.slane %v484, 0
    %487 = vrot.lane.b32.xlu0 %v485, 13
    %v488 = vpop.permute.xlu0 %487
    %v490 = vmul.f32 %v483, %v488
    %492 = vrot.lane.b32.xlu0 %v490, 115
    %v493 = vpop.permute.xlu0 %492
    %495 = vst.msk [vmem:[#allocation3 + $0xa0] sm:$0xff] %vm139, %v493
    %v496 = vld [vmem:[#allocation2 + $0x8] sm:$0xff]
    %v497 = vld [vmem:[%s3 + $0x15] sm:$0x1]
    %v498 = vperm.slane %v497, 0
    %500 = vrot.lane.b32.xlu0 %v498, 15
    %v501 = vpop.permute.xlu0 %500
    %v503 = vmul.f32 %v496, %v501
    %505 = vrot.lane.b32.xlu0 %v503, 113
    %v506 = vpop.permute.xlu0 %505
    %508 = vst.msk [vmem:[#allocation3 + $0xa8] sm:$0xff] %vm139, %v506
    %v509 = vld [vmem:[#allocation2 + $0x8] sm:$0xff]
    %v510 = vld [vmem:[%s3 + $0x16] sm:$0x1]
    %v511 = vperm.slane %v510, 0
    %513 = vrot.lane.b32.xlu0 %v511, 16
    %v514 = vpop.permute.xlu0 %513
    %v516 = vmul.f32 %v509, %v514
    %518 = vrot.lane.b32.xlu0 %v516, 112
    %v519 = vpop.permute.xlu0 %518
    %521 = vst.msk [vmem:[#allocation3 + $0xb0] sm:$0xff] %vm139, %v519
    %v522 = vld [vmem:[#allocation2 + $0x8] sm:$0xff]
    %v523 = vld [vmem:[%s3 + $0x17] sm:$0x1]
    %v524 = vperm.slane %v523, 0
    %526 = vrot.lane.b32.xlu0 %v524, 17
    %v527 = vpop.permute.xlu0 %526
    %v529 = vmul.f32 %v522, %v527
    %531 = vrot.lane.b32.xlu0 %v529, 111
    %v532 = vpop.permute.xlu0 %531
    %534 = vst.msk [vmem:[#allocation3 + $0xb8] sm:$0xff] %vm139, %v532
    %v535 = vld [vmem:[#allocation2 + $0x8] sm:$0xff]
    %v536 = vld [vmem:[%s3 + $0x18] sm:$0x1]
    %v537 = vperm.slane %v536, 0
    %539 = vrot.lane.b32.xlu0 %v537, 19
    %v540 = vpop.permute.xlu0 %539
    %v542 = vmul.f32 %v535, %v540
    %544 = vrot.lane.b32.xlu0 %v542, 109
    %v545 = vpop.permute.xlu0 %544
    %547 = vst.msk [vmem:[#allocation3 + $0xc0] sm:$0xff] %vm139, %v545
    %v548 = vld [vmem:[#allocation2 + $0x8] sm:$0xff]
    %v549 = vld [vmem:[%s3 + $0x19] sm:$0x1]
    %v550 = vperm.slane %v549, 0
    %552 = vrot.lane.b32.xlu0 %v550, 20
    %v553 = vpop.permute.xlu0 %552
    %v555 = vmul.f32 %v548, %v553
    %557 = vrot.lane.b32.xlu0 %v555, 108
    %v558 = vpop.permute.xlu0 %557
    %560 = vst.msk [vmem:[#allocation3 + $0xc8] sm:$0xff] %vm139, %v558
    %v561 = vld [vmem:[#allocation2 + $0x8] sm:$0xff]
    %v562 = vld [vmem:[%s3 + $0x1a] sm:$0x1]
    %v563 = vperm.slane %v562, 0
    %565 = vrot.lane.b32.xlu0 %v563, 21
    %v566 = vpop.permute.xlu0 %565
    %v568 = vmul.f32 %v561, %v566
    %570 = vrot.lane.b32.xlu0 %v568, 107
    %v571 = vpop.permute.xlu0 %570
    %573 = vst.msk [vmem:[#allocation3 + $0xd0] sm:$0xff] %vm139, %v571
    %v574 = vld [vmem:[#allocation9] sm:$0xff]
    %v575 = vld [vmem:[#allocation9 + $0x8] sm:$0xff]
    %v576 = vld [vmem:[#allocation3] sm:$0xff]
    %v577 = vld [vmem:[#allocation3 + $0x8] sm:$0xff]
    %v578 = vld [vmem:[#allocation3 + $0x10] sm:$0xff]
    %v579 = vld [vmem:[#allocation3 + $0x18] sm:$0xff]
    %v580 = vld [vmem:[#allocation3 + $0x20] sm:$0xff]
    %v581 = vld [vmem:[#allocation3 + $0x28] sm:$0xff]
    %v582 = vld [vmem:[#allocation3 + $0x30] sm:$0xff]
    %v583 = vld [vmem:[#allocation3 + $0x38] sm:$0xff]
    %v584 = vld [vmem:[#allocation3 + $0x40] sm:$0xff]
    %v585 = vld [vmem:[#allocation3 + $0x48] sm:$0xff]
    %v586 = vld [vmem:[#allocation3 + $0x50] sm:$0xff]
    %v587 = vld [vmem:[#allocation3 + $0x58] sm:$0xff]
    %v588 = vld [vmem:[#allocation3 + $0x60] sm:$0xff]
    %v589 = vld [vmem:[#allocation3 + $0x68] sm:$0xff]
    %v590 = vld [vmem:[#allocation3 + $0x70] sm:$0xff]
    %v591 = vld [vmem:[#allocation3 + $0x78] sm:$0xff]
    %v592 = vld [vmem:[#allocation3 + $0x80] sm:$0xff]
    %v593 = vld [vmem:[#allocation3 + $0x88] sm:$0xff]
    %v594 = vld [vmem:[#allocation3 + $0x90] sm:$0xff]
    %v595 = vld [vmem:[#allocation3 + $0x98] sm:$0xff]
    %v596 = vld [vmem:[#allocation3 + $0xa0] sm:$0xff]
    %v597 = vld [vmem:[#allocation3 + $0xa8] sm:$0xff]
    %v598 = vld [vmem:[#allocation3 + $0xb0] sm:$0xff]
    %v599 = vld [vmem:[#allocation3 + $0xb8] sm:$0xff]
    %v600 = vld [vmem:[#allocation3 + $0xc0] sm:$0xff]
    %v601 = vld [vmem:[#allocation3 + $0xc8] sm:$0xff]
    %v602 = vld [vmem:[#allocation3 + $0xd0] sm:$0xff]
    %v603 = vld [vmem:[%s7] sm:$0xff]
    %605 = vset.pattern.permute.xlu0 0
    %606 = vperm.xlu0 %605, %v603
    %v607 = vpop.permute.xlu0 %606
    %vm609 = vcmask 719872
    %v611 = vsel %vm609, %v575, 0
    %613 = vmatpush.msra.mxu0 %v591
    %614 = vmatpush.msra.mxu0 %v590
    %615 = vmatpush.msra.mxu0 %v589
    %616 = vmatpush.msra.mxu0 %v588
    %617 = vmatpush.msra.mxu0 %v587
    %618 = vmatpush.msra.mxu0 %v586
    %619 = vmatpush.msra.mxu0 %v585
    %620 = vmatpush.msra.mxu0 %v584
    %621 = vmatpush.msra.mxu0 %v583
    %622 = vmatpush.msra.mxu0 %v582
    %623 = vmatpush.msra.mxu0 %v581
    %624 = vmatpush.msra.mxu0 %v580
    %625 = vmatpush.msra.mxu0 %v579
    %626 = vmatpush.msra.mxu0 %v578
    %627 = vmatpush.msra.mxu0 %v577
    %628 = vmatpush.msra.mxu0 %v576
    %629 = vmatmul.f32.gmra.mxu0 %v574
    %v630 = vpop.f32.mrf.mxu0
    %v631 = vadd.f32 %v607, %v630
    %632 = vdwg.mxu0
    %633 = vmatpush.msra.mxu0 0.0
    %634 = vmatpush.msra.mxu0 0.0
    %635 = vmatpush.msra.mxu0 0.0
    %636 = vmatpush.msra.mxu0 0.0
    %637 = vmatpush.msra.mxu0 0.0
    %638 = vmatpush.msra.mxu0 %v602
    %639 = vmatpush.msra.mxu0 %v601
    %640 = vmatpush.msra.mxu0 %v600
    %641 = vmatpush.msra.mxu0 %v599
    %642 = vmatpush.msra.mxu0 %v598
    %643 = vmatpush.msra.mxu0 %v597
    %644 = vmatpush.msra.mxu0 %v596
    %645 = vmatpush.msra.mxu0 %v595
    %646 = vmatpush.msra.mxu0 %v594
    %647 = vmatpush.msra.mxu0 %v593
    %648 = vmatpush.msra.mxu0 %v592
    %649 = vmatmul.f32.gmra.mxu0 %v611
    %v650 = vpop.f32.mrf.mxu0
    %v651 = vadd.f32 %v631, %v650
    %652 = vdwg.mxu0
    %653 = vst.msk [vmem:[#allocation10] sm:$0xff] %vm139, %v651
    // Predicated region
    $region50: #{tpu_custom_call.1} parent=1 // pred_check
      _
    $region51: #{tpu_custom_call.1} parent=1 // pred_check_branch
      %655 = sbr.rel (0) target = $region53
    $region52: #{tpu_custom_call.1} parent=1 // pred_region
      %657 = vsyncadd [#allocation6], 0
      %s659 = sshll.u32 [#allocation10], 4
      %s660 = int_to_ptr.vmem [resolvable:$true] %s659
      %s661 = sshll.u32 %s8, 4
      %s662 = int_to_ptr.hbm [resolvable:$true] %s661
      %664 = dma.vmem_to_hbm [thread:$0]  %s660, 128, %s662, [#allocation6]
    $region53: #{tpu_custom_call.1} parent=1 // pred_fallthru
      _
    // Predicated region
    $region54: #{tpu_custom_call.1} parent=1 // pred_check
      _
    $region55: #{tpu_custom_call.1} parent=1 // pred_check_branch
      %666 = sbr.rel (0) target = $region57
    $region56: #{tpu_custom_call.1} parent=1 // pred_region
      %668 = dma.done [#allocation6], 128
    $region57: #{tpu_custom_call.1} parent=1 // pred_fallthru
      _
    %669 = vsyncpa [#allocation5], 1
    %670 = vsyncpa [#allocation8], 1
    %671 = vsyncpa [#allocation6], 1

</llo_original>
